<compile_context>
chip_gen: v6e
topology: v6e:2x2x1
jax: 0.10.0
libtpu: 0.0.40
codegen_flags: <defaults>
</compile_context>

<pallas_src>
import functools

import jax
import jax.numpy as jnp
from jax.experimental import pallas as pl
from jax.experimental.pallas import tpu as pltpu

LANE = 128


def _round_up(x, m):
    return ((x + m - 1) // m) * m


def attention_matching_kernel(
    x_ref,                     # [R, 2Lp] f32, R = bblk*C  (spt | qry, lane-padded)
    wa_ref,                    # [2Lp, Hp1+Hp2] bf16: [:, :Hp1]=blockdiag(ws1,wq1), [:, Hp1:]=fusion-in
    wb_ref,                    # [Hp1+Hp2, 2Lp] bf16: [:Hp1]=blockdiag(ws2,wq2),   [Hp1:]=fusion-out
    bias_ref,                  # [4, 2Lp] f32: row0=bs1|bq1, row1=bf1, row2=bs2|bq2, row3=bf2
    out_ref,                   # [R, 2Lp] f32
    *, band_is_low_or_high: bool, bblk: int, c: int, lp: int, hp1: int, hp2: int):
    f32, bf16 = jnp.float32, jnp.bfloat16
    two_lp = 2 * lp
    x = x_ref[...]                                     # [R, 2Lp] f32

    # ---- sigmoid(cosine similarity over the channel axis), per batch ---------
    x3 = x.reshape(bblk, c, two_lp)                    # free major-dim split
    spt = x3[:, :, :lp]                                # lane-aligned views
    qry = x3[:, :, lp:]
    dot = jnp.sum(spt * qry, axis=1, keepdims=True)    # [bblk, 1, Lp]
    ss = jnp.sum(spt * spt, axis=1, keepdims=True)
    qq = jnp.sum(qry * qry, axis=1, keepdims=True)
    eps2 = 1e-24                                       # (F.normalize eps)^2
    denom2 = jnp.maximum(ss, eps2) * jnp.maximum(qq, eps2)
    # extra clamp guards all-zero (padded) lanes against underflow -> inf/NaN
    cos = dot * jax.lax.rsqrt(jnp.maximum(denom2, 1e-30))
    sim = jax.nn.sigmoid(cos)                          # [bblk, 1, Lp]
    gate = (1.0 - sim) if band_is_low_or_high else sim # static python branch
    gate2 = jnp.concatenate([gate, gate], axis=-1)     # [bblk, 1, 2Lp] (aligned concat)

    # ---- fused spt/qry projections via block-diagonal weights ----------------
    #   relu(relu([spt|qry] @ W1 + b1) @ W2 + b2) == [spt_proj | qry_proj]
    xb = x.astype(bf16)
    h = jnp.dot(xb, wa_ref[:, :hp1], preferred_element_type=f32) + bias_ref[0:1, :hp1]
    h = jnp.maximum(h, 0.0).astype(bf16)               # [R, Hp1] (lane-dense)
    proj = jnp.dot(h, wb_ref[:hp1, :], preferred_element_type=f32) + bias_ref[2:3, :]
    proj = jnp.maximum(proj, 0.0)                      # [R, 2Lp]

    # ---- band gating + fc_fusion (already in the fused layout) ---------------
    proj3 = proj.reshape(bblk, c, two_lp)
    combined = (gate2 * proj3).reshape(bblk * c, two_lp).astype(bf16)
    hf = jnp.dot(combined, wa_ref[:, hp1:], preferred_element_type=f32) + bias_ref[1:2, :hp2]
    hf = jnp.maximum(hf, 0.0).astype(bf16)             # [R, Hp2]
    fused = jnp.dot(hf, wb_ref[hp1:, :], preferred_element_type=f32) + bias_ref[3:4, :]
    out_ref[...] = jnp.maximum(fused, 0.0)             # [R, 2Lp], lane-dense store


def pack_params(params, L, Lp, h1, h2):
    """Fuse + pad the 12 per-layer arrays into 2 bf16 weight slabs and 1 f32 bias slab.

    Hidden dims are padded to multiples of 128 lanes; padded rows/columns are
    zero so they never perturb any sum-of-products."""
    ws1, bs1, ws2, bs2, wq1, bq1, wq2, bq2, wf1, bf1, wf2, bf2 = params
    f32, bf16 = jnp.float32, jnp.bfloat16
    hp1 = _round_up(2 * h1, LANE)                      # padded width of proj hidden
    hp2 = _round_up(h2, LANE)                          # padded width of fusion hidden

    # wA: [2Lp, Hp1+Hp2] = [ blockdiag(ws1, wq1) | fusion layer-1 (rows re-split at Lp) ]
    wa = jnp.zeros((2 * Lp, hp1 + hp2), f32)
    wa = wa.at[:L, :h1].set(ws1)
    wa = wa.at[Lp:Lp + L, h1:2 * h1].set(wq1)
    wa = wa.at[:L, hp1:hp1 + h2].set(wf1[:L])
    wa = wa.at[Lp:Lp + L, hp1:hp1 + h2].set(wf1[L:])

    # wB: [Hp1+Hp2, 2Lp] = [ blockdiag(ws2, wq2) ; fusion layer-2 (cols re-split at Lp) ]
    wb = jnp.zeros((hp1 + hp2, 2 * Lp), f32)
    wb = wb.at[:h1, :L].set(ws2)
    wb = wb.at[h1:2 * h1, Lp:Lp + L].set(wq2)
    wb = wb.at[hp1:hp1 + h2, :L].set(wf2[:, :L])
    wb = wb.at[hp1:hp1 + h2, Lp:Lp + L].set(wf2[:, L:])

    bias = jnp.zeros((4, 2 * Lp), f32)                 # all biases in one slab
    bias = bias.at[0, :h1].set(bs1[0]).at[0, h1:2 * h1].set(bq1[0])
    bias = bias.at[1, :h2].set(bf1[0])
    bias = bias.at[2, :L].set(bs2[0]).at[2, Lp:Lp + L].set(bq2[0])
    bias = bias.at[3, :L].set(bf2[0, :L]).at[3, Lp:Lp + L].set(bf2[0, L:])

    return wa.astype(bf16), wb.astype(bf16), bias, hp1, hp2


def _pick_block_b(B, C, max_rows, min_steps):
    """Largest divisor of B s.t. rows/step <= max_rows and grid steps >= min_steps."""
    best = 1
    for bb in range(1, B + 1):
        if B % bb == 0 and bb * C <= max_rows and (B // bb) >= min_steps:
            best = bb
    return best


def attention_matching(spt_fg_fts, qry_fg_fts, params, band, *,
                       max_rows_per_step=256, min_steps=1, strip_padding=True):
    """spt_fg_fts / qry_fg_fts: [B, C, L] float32.  Returns [B, C, 2L].

    On v7x pass min_steps=2 (when B allows) so both TensorCores get work; on
    v5e/v6e a single large step is preferred at small B."""
    B, C, L = spt_fg_fts.shape
    assert C % 8 == 0, "channel count must be a multiple of 8 (sublane tiling)"
    Lp = _round_up(L, LANE)
    h1 = params[0].shape[1]                  # seq_len // 10
    h2 = params[8].shape[1]                  # seq_len // 5
    wa, wb, bias, hp1, hp2 = pack_params(params, L, Lp, h1, h2)

    # Pack [spt | qry] into a single lane-padded slab: [B*C, 2Lp].
    if L == Lp:
        x = jnp.concatenate([spt_fg_fts, qry_fg_fts], axis=-1).reshape(B * C, 2 * Lp)
    else:
        x = jnp.zeros((B, C, 2 * Lp), jnp.float32)
        x = x.at[..., :L].set(spt_fg_fts).at[..., Lp:Lp + L].set(qry_fg_fts)
        x = x.reshape(B * C, 2 * Lp)

    bblk = _pick_block_b(B, C, max_rows_per_step, min_steps)
    steps = B // bblk
    R = bblk * C

    kernel = functools.partial(
        attention_matching_kernel,
        band_is_low_or_high=(band in ("low", "high")),
        bblk=bblk, c=C, lp=Lp, hp1=hp1, hp2=hp2)

    resident = lambda a: pl.BlockSpec(a.shape, lambda i: (0, 0))   # weights stay VMEM-resident

    out = pl.pallas_call(
        kernel,
        out_shape=jax.ShapeDtypeStruct((B * C, 2 * Lp), jnp.float32),
        grid=(steps,),
        in_specs=[
            pl.BlockSpec((R, 2 * Lp), lambda i: (i, 0)),           # bblk batches per step
            resident(wa), resident(wb), resident(bias),
        ],
        out_specs=pl.BlockSpec((R, 2 * Lp), lambda i: (i, 0)),
        compiler_params=pltpu.CompilerParams(
            dimension_semantics=("parallel",)),                    # megacore-shard over steps
    )(x, wa, wb, bias)

    out = out.reshape(B, C, 2 * Lp)
    if L == Lp or not strip_padding:
        # No padding (or caller accepts the padded [.., :L]|[.., Lp:Lp+L] layout).
        return out if L == Lp else out
    # strip the lane padding: output cols [0:L] and [Lp:Lp+L] are the real 2L features
    return jnp.concatenate([out[..., :L], out[..., Lp:Lp + L]], axis=-1)


def init_params(key, seq_len):
    """Deterministic synthetic init matching the nn.Linear shapes.
    Weights are stored as [in_features, out_features] (pre-transposed)."""
    h1 = seq_len // 10
    h2 = seq_len // 5
    shapes = [
        ((seq_len, h1), (1, h1)), ((h1, seq_len), (1, seq_len)),              # fc_spt
        ((seq_len, h1), (1, h1)), ((h1, seq_len), (1, seq_len)),              # fc_qry
        ((2 * seq_len, h2), (1, h2)), ((h2, 2 * seq_len), (1, 2 * seq_len)),  # fc_fusion
    ]
    params = []
    for w_shape, b_shape in shapes:
        key, kw, kb = jax.random.split(key, 3)
        bound = 1.0 / jnp.sqrt(jnp.float32(w_shape[0]))
        w = jax.random.uniform(kw, w_shape, jnp.float32, -bound, bound)
        b = jax.random.uniform(kb, b_shape, jnp.float32, -bound, bound)
        params += [w, b]
    return params


def attention_matching_ref(spt, qry, params, band):
    """Pure-JAX reference of the PyTorch forward ([B, C, L] inputs)."""
    ws1, bs1, ws2, bs2, wq1, bq1, wq2, bq2, wf1, bf1, wf2, bf2 = params
    relu = lambda x: jnp.maximum(x, 0.0)
    spt_proj = relu(relu(spt @ ws1 + bs1) @ ws2 + bs2)
    qry_proj = relu(relu(qry @ wq1 + bq1) @ wq2 + bq2)
    eps = 1e-12
    sn = spt / jnp.maximum(jnp.linalg.norm(spt, axis=1, keepdims=True), eps)
    qn = qry / jnp.maximum(jnp.linalg.norm(qry, axis=1, keepdims=True), eps)
    sim = jax.nn.sigmoid(jnp.sum(sn * qn, axis=1, keepdims=True))
    if band in ("low", "high"):
        w_spt, w_qry = (1.0 - sim) * spt_proj, (1.0 - sim) * qry_proj
    else:
        w_spt, w_qry = sim * spt_proj, sim * qry_proj
    combined = jnp.concatenate([w_spt, w_qry], axis=2)
    return relu(relu(combined @ wf1 + bf1) @ wf2 + bf2)


if __name__ == "__main__":
    # Small shapes consistent with the module: feature_dim=32, seq_len=80, batch=2
    # (B > 1 exercises the per-batch channel-axis cosine reduction and batch-blocking).
    feature_dim, seq_len, batch = 32, 80, 2

    key = jax.random.PRNGKey(0)
    k_spt, k_qry, k_par = jax.random.split(key, 3)
    spt = jax.random.normal(k_spt, (batch, feature_dim, seq_len), jnp.float32)
    qry = jax.random.normal(k_qry, (batch, feature_dim, seq_len), jnp.float32)
    params = init_params(k_par, seq_len)

    # The kernel ships its weights to the MXU in bf16; the reference uses the same
    # bf16-rounded weights (biases stay f32), so the only remaining delta is the
    # in-kernel bf16 activation rounding -> compare at bf16-level tolerance.
    params_ref = [p.astype(jnp.bfloat16).astype(jnp.float32) if i % 2 == 0 else p
                  for i, p in enumerate(params)]

    for band in ("low", "mid"):   # 'low'/'high' -> (1 - sim) gating; anything else -> sim
        out = jax.block_until_ready(attention_matching(spt, qry, params, band))
        ref = attention_matching_ref(spt, qry, params_ref, band)
        assert out.shape == (batch, feature_dim, 2 * seq_len)
        assert jnp.allclose(out, ref, atol=2e-2, rtol=2e-2), f"mismatch vs reference ({band})"

    print("KERNEL_OK")
</pallas_src>

<mosaic_0001>
module attributes {stable_mosaic.version = 11 : i64} {
  func.func @attention_matching_kernel(%arg0: i32, %arg1: memref<64x256xf32, #tpu.memory_space<vmem>>, %arg2: memref<256x256xbf16, #tpu.memory_space<vmem>>, %arg3: memref<256x256xbf16, #tpu.memory_space<vmem>>, %arg4: memref<4x256xf32, #tpu.memory_space<vmem>>, %arg5: memref<64x256xf32, #tpu.memory_space<vmem>>) attributes {dimension_semantics = [#tpu.dimension_semantics<parallel>], iteration_bounds = array<i64: 1>, scalar_prefetch = 0 : i64, scratch_operands = 0 : i64, tpu.core_type = #tpu.core_type<tc>, window_params = [{transform_indices = @transform_0, window_bounds = array<i64: 64, 256>}, {pipeline_mode = #tpu.pipeline_mode<synchronous>, transform_indices = @transform_1, window_bounds = array<i64: 256, 256>}, {pipeline_mode = #tpu.pipeline_mode<synchronous>, transform_indices = @transform_2, window_bounds = array<i64: 256, 256>}, {pipeline_mode = #tpu.pipeline_mode<synchronous>, transform_indices = @transform_3, window_bounds = array<i64: 4, 256>}, {transform_indices = @transform_4, window_bounds = array<i64: 64, 256>}]} {
    %c0 = arith.constant 0 : index
    %c0_0 = arith.constant 0 : index
    %0 = vector.load %arg1[%c0, %c0_0] : memref<64x256xf32, #tpu.memory_space<vmem>>, vector<64x256xf32>
    %1 = vector.shape_cast %0 : vector<64x256xf32> to vector<2x32x256xf32>
    %2 = vector.extract_strided_slice %1 {offsets = [0, 0, 0], sizes = [2, 32, 128], strides = [1, 1, 1]} : vector<2x32x256xf32> to vector<2x32x128xf32>
    %3 = vector.extract_strided_slice %1 {offsets = [0, 0, 128], sizes = [2, 32, 128], strides = [1, 1, 1]} : vector<2x32x256xf32> to vector<2x32x128xf32>
    %4 = arith.mulf %2, %3 : vector<2x32x128xf32>
    %cst = arith.constant dense<0.000000e+00> : vector<2x128xf32>
    %5 = vector.multi_reduction <add>, %4, %cst [1] : vector<2x32x128xf32> to vector<2x128xf32>
    %6 = vector.shape_cast %5 : vector<2x128xf32> to vector<2x1x128xf32>
    %7 = arith.mulf %2, %2 : vector<2x32x128xf32>
    %cst_1 = arith.constant dense<0.000000e+00> : vector<2x128xf32>
    %8 = vector.multi_reduction <add>, %7, %cst_1 [1] : vector<2x32x128xf32> to vector<2x128xf32>
    %9 = vector.shape_cast %8 : vector<2x128xf32> to vector<2x1x128xf32>
    %10 = arith.mulf %3, %3 : vector<2x32x128xf32>
    %cst_2 = arith.constant dense<0.000000e+00> : vector<2x128xf32>
    %11 = vector.multi_reduction <add>, %10, %cst_2 [1] : vector<2x32x128xf32> to vector<2x128xf32>
    %12 = vector.shape_cast %11 : vector<2x128xf32> to vector<2x1x128xf32>
    %cst_3 = arith.constant 1.000000e-24 : f32
    %13 = vector.broadcast %cst_3 : f32 to vector<2x1x128xf32>
    %14 = arith.maximumf %9, %13 : vector<2x1x128xf32>
    %cst_4 = arith.constant 1.000000e-24 : f32
    %15 = vector.broadcast %cst_4 : f32 to vector<2x1x128xf32>
    %16 = arith.maximumf %12, %15 : vector<2x1x128xf32>
    %17 = arith.mulf %14, %16 : vector<2x1x128xf32>
    %cst_5 = arith.constant 1.000000e-30 : f32
    %18 = vector.broadcast %cst_5 : f32 to vector<2x1x128xf32>
    %19 = arith.maximumf %17, %18 : vector<2x1x128xf32>
    %20 = math.rsqrt %19 : vector<2x1x128xf32>
    %21 = arith.mulf %6, %20 : vector<2x1x128xf32>
    %22 = arith.negf %21 : vector<2x1x128xf32>
    %23 = math.exp %22 : vector<2x1x128xf32>
    %cst_6 = arith.constant 1.000000e+00 : f32
    %24 = vector.broadcast %cst_6 : f32 to vector<2x1x128xf32>
    %25 = arith.addf %24, %23 : vector<2x1x128xf32>
    %26 = arith.divf %24, %25 : vector<2x1x128xf32>
    %cst_7 = arith.constant 1.000000e+00 : f32
    %27 = vector.broadcast %cst_7 : f32 to vector<2x1x128xf32>
    %28 = arith.subf %27, %26 : vector<2x1x128xf32>
    %29 = tpu.concatenate %28, %28 in 2 : vector<2x1x128xf32>, vector<2x1x128xf32> -> vector<2x1x256xf32>
    %30 = arith.truncf %0 : vector<64x256xf32> to vector<64x256xbf16>
    %c0_8 = arith.constant 0 : index
    %c0_9 = arith.constant 0 : index
    %31 = vector.load %arg2[%c0_8, %c0_9] : memref<256x256xbf16, #tpu.memory_space<vmem>>, vector<256x128xbf16>
    %cst_10 = arith.constant dense<0.000000e+00> : vector<64x128xf32>
    %32 = tpu.matmul %30, %31, %cst_10 {dimension_numbers = #tpu.dot_dimension_numbers<[1], [0], [0], [1], [0, 0, 1, 1], [], []>} : vector<64x256xbf16>, vector<256x128xbf16>, vector<64x128xf32> -> vector<64x128xf32>
    %c0_11 = arith.constant 0 : index
    %c0_12 = arith.constant 0 : index
    %33 = vector.load %arg4[%c0_11, %c0_12] : memref<4x256xf32, #tpu.memory_space<vmem>>, vector<1x128xf32>
    %34 = vector.broadcast %33 : vector<1x128xf32> to vector<64x128xf32>
    %35 = arith.addf %32, %34 : vector<64x128xf32>
    %cst_13 = arith.constant 0.000000e+00 : f32
    %36 = vector.broadcast %cst_13 : f32 to vector<64x128xf32>
    %37 = arith.maximumf %35, %36 : vector<64x128xf32>
    %38 = arith.truncf %37 : vector<64x128xf32> to vector<64x128xbf16>
    %c0_14 = arith.constant 0 : index
    %c0_15 = arith.constant 0 : index
    %39 = vector.load %arg3[%c0_14, %c0_15] : memref<256x256xbf16, #tpu.memory_space<vmem>>, vector<128x256xbf16>
    %cst_16 = arith.constant dense<0.000000e+00> : vector<64x256xf32>
    %40 = tpu.matmul %38, %39, %cst_16 {dimension_numbers = #tpu.dot_dimension_numbers<[1], [0], [0], [1], [0, 0, 1, 1], [], []>} : vector<64x128xbf16>, vector<128x256xbf16>, vector<64x256xf32> -> vector<64x256xf32>
    %c2 = arith.constant 2 : index
    %c0_17 = arith.constant 0 : index
    %41 = vector.load %arg4[%c2, %c0_17] : memref<4x256xf32, #tpu.memory_space<vmem>>, vector<1x256xf32>
    %42 = vector.broadcast %41 : vector<1x256xf32> to vector<64x256xf32>
    %43 = arith.addf %40, %42 : vector<64x256xf32>
    %cst_18 = arith.constant 0.000000e+00 : f32
    %44 = vector.broadcast %cst_18 : f32 to vector<64x256xf32>
    %45 = arith.maximumf %43, %44 : vector<64x256xf32>
    %46 = vector.shape_cast %45 : vector<64x256xf32> to vector<2x32x256xf32>
    %47 = vector.broadcast %29 : vector<2x1x256xf32> to vector<2x32x256xf32>
    %48 = arith.mulf %47, %46 : vector<2x32x256xf32>
    %49 = vector.shape_cast %48 : vector<2x32x256xf32> to vector<64x256xf32>
    %50 = arith.truncf %49 : vector<64x256xf32> to vector<64x256xbf16>
    %c0_19 = arith.constant 0 : index
    %c128 = arith.constant 128 : index
    %51 = vector.load %arg2[%c0_19, %c128] : memref<256x256xbf16, #tpu.memory_space<vmem>>, vector<256x128xbf16>
    %cst_20 = arith.constant dense<0.000000e+00> : vector<64x128xf32>
    %52 = tpu.matmul %50, %51, %cst_20 {dimension_numbers = #tpu.dot_dimension_numbers<[1], [0], [0], [1], [0, 0, 1, 1], [], []>} : vector<64x256xbf16>, vector<256x128xbf16>, vector<64x128xf32> -> vector<64x128xf32>
    %c1 = arith.constant 1 : index
    %c0_21 = arith.constant 0 : index
    %53 = vector.load %arg4[%c1, %c0_21] : memref<4x256xf32, #tpu.memory_space<vmem>>, vector<1x128xf32>
    %54 = vector.broadcast %53 : vector<1x128xf32> to vector<64x128xf32>
    %55 = arith.addf %52, %54 : vector<64x128xf32>
    %cst_22 = arith.constant 0.000000e+00 : f32
    %56 = vector.broadcast %cst_22 : f32 to vector<64x128xf32>
    %57 = arith.maximumf %55, %56 : vector<64x128xf32>
    %58 = arith.truncf %57 : vector<64x128xf32> to vector<64x128xbf16>
    %c128_23 = arith.constant 128 : index
    %c0_24 = arith.constant 0 : index
    %59 = vector.load %arg3[%c128_23, %c0_24] : memref<256x256xbf16, #tpu.memory_space<vmem>>, vector<128x256xbf16>
    %cst_25 = arith.constant dense<0.000000e+00> : vector<64x256xf32>
    %60 = tpu.matmul %58, %59, %cst_25 {dimension_numbers = #tpu.dot_dimension_numbers<[1], [0], [0], [1], [0, 0, 1, 1], [], []>} : vector<64x128xbf16>, vector<128x256xbf16>, vector<64x256xf32> -> vector<64x256xf32>
    %c3 = arith.constant 3 : index
    %c0_26 = arith.constant 0 : index
    %61 = vector.load %arg4[%c3, %c0_26] : memref<4x256xf32, #tpu.memory_space<vmem>>, vector<1x256xf32>
    %62 = vector.broadcast %61 : vector<1x256xf32> to vector<64x256xf32>
    %63 = arith.addf %60, %62 : vector<64x256xf32>
    %cst_27 = arith.constant 0.000000e+00 : f32
    %64 = vector.broadcast %cst_27 : f32 to vector<64x256xf32>
    %65 = arith.maximumf %63, %64 : vector<64x256xf32>
    %c0_28 = arith.constant 0 : index
    %c0_29 = arith.constant 0 : index
    %66 = vector.load %arg5[%c0_28, %c0_29] : memref<64x256xf32, #tpu.memory_space<vmem>>, vector<64x256xf32>
    tpu.vector_store %arg5[%c0_28, %c0_29], %65 {strides = array<i32>} : memref<64x256xf32, #tpu.memory_space<vmem>>, vector<64x256xf32>,
    return
  }
  func.func @transform_0(%arg0: i32) -> (i32, i32) {
    %c0_i32 = arith.constant 0 : i32
    %c0_i32_0 = arith.constant 0 : i32
    return %arg0, %c0_i32 : i32, i32
  }
  func.func @transform_1(%arg0: i32) -> (i32, i32) {
    %c0_i32 = arith.constant 0 : i32
    %c0_i32_0 = arith.constant 0 : i32
    %c0_i32_1 = arith.constant 0 : i32
    return %c0_i32, %c0_i32_0 : i32, i32
  }
  func.func @transform_2(%arg0: i32) -> (i32, i32) {
    %c0_i32 = arith.constant 0 : i32
    %c0_i32_0 = arith.constant 0 : i32
    %c0_i32_1 = arith.constant 0 : i32
    return %c0_i32, %c0_i32_0 : i32, i32
  }
  func.func @transform_3(%arg0: i32) -> (i32, i32) {
    %c0_i32 = arith.constant 0 : i32
    %c0_i32_0 = arith.constant 0 : i32
    %c0_i32_1 = arith.constant 0 : i32
    return %c0_i32, %c0_i32_0 : i32, i32
  }
  func.func @transform_4(%arg0: i32) -> (i32, i32) {
    %c0_i32 = arith.constant 0 : i32
    %c0_i32_0 = arith.constant 0 : i32
    return %arg0, %c0_i32 : i32, i32
  }
}

</mosaic_0001>

<llo_original>
// kernel: tpu_custom_call.1
$region0: #{tpu_custom_call.1}
  #allocation0 [shape = 'u32[]', space=smem, size = 0x4, offset = 0x4, fixed_abs, tag = 'smem constant byte address 0x4 - core index']
  #allocation1 [shape = 'u32[144,128]{1,0:T(1,128)}', space=vmem, size = 0x12000, scoped, tag = 'internal scratch']
  %s0 = inlined_call_operand.hbm [shape: f32[64,256], index: 0, kind: input, shape index: {}]
  %s1 = inlined_call_operand.hbm [shape: bf16[256,256], index: 1, kind: input, shape index: {}]
  %s2 = inlined_call_operand.hbm [shape: bf16[256,256], index: 2, kind: input, shape index: {}]
  %s3 = inlined_call_operand.hbm [shape: f32[4,256], index: 3, kind: input, shape index: {}]
  %s4 = inlined_call_operand.hbm [shape: f32[64,256], index: 4, kind: output, shape index: {}]
  %s5 = sld [smem:[#allocation0]]
  $region42: #{tpu_custom_call.1} parent=0
    _
  %s7 = ssub.s32 1, %s5
  %s8 = scalar_select 0, %s7, %s5
  $region1: #{tpu_custom_call.1} parent=0
    #allocation2 [shape = 'u8[65536]{0}', space=vmem, size = 0x10000, scoped, tag = 'input window, operand 0, single buffered']
    #allocation3 [shape = 's32[1]{0}', space=sflag, size = 0x4, scoped, tag = 'scoped memory for tpu_custom_call.1']
    #allocation4 [shape = 's32[1]{0}', space=sflag, size = 0x4, scoped, tag = 'scoped memory for tpu_custom_call.1']
    #allocation5 [shape = 'u8[131072]{0}', space=vmem, size = 0x20000, scoped, tag = 'input window, operand 1, single buffered']
    #allocation6 [shape = 's32[1]{0}', space=sflag, size = 0x4, scoped, tag = 'scoped memory for tpu_custom_call.1']
    #allocation7 [shape = 'u8[131072]{0}', space=vmem, size = 0x20000, scoped, tag = 'input window, operand 2, single buffered']
    #allocation8 [shape = 'u8[4096]{0}', space=vmem, size = 0x1000, scoped, tag = 'input window, operand 3, single buffered']
    #allocation9 [shape = 's32[1]{0}', space=sflag, size = 0x4, scoped, tag = 'scoped memory for tpu_custom_call.1']
    #allocation10 [shape = 'u8[65536]{0}', space=vmem, size = 0x10000, scoped, tag = 'output window, operand 0, single buffered']
    %9 = vsyncpa [#allocation3], 0
    %10 = vsyncpa [#allocation6], 0
    %11 = vsyncpa [#allocation9], 0
    %12 = vsyncpa [#allocation4], 0
    // Predicated region
    $region2: #{tpu_custom_call.1} parent=1 // pred_check
      _
    $region3: #{tpu_custom_call.1} parent=1 // pred_check_branch
      %14 = sbr.rel (0) target = $region5
    $region4: #{tpu_custom_call.1} parent=1 // pred_region
      %s16 = ssub.s32 2048, 2048
      %17 = vsyncadd [#allocation3], %s16
      %s18 = sshll.u32 [#allocation2], 4
      %s19 = int_to_ptr.vmem [resolvable:$true] %s18
      %24 = dma.hbm_to_vmem [thread:$0]  %s0, 2048, %s19, [#allocation3], 256, 256, 16
    $region5: #{tpu_custom_call.1} parent=1 // pred_fallthru
      _
    // Predicated region
    $region6: #{tpu_custom_call.1} parent=1 // pred_check
      _
    $region7: #{tpu_custom_call.1} parent=1 // pred_check_branch
      %26 = sbr.rel (0) target = $region9
    $region8: #{tpu_custom_call.1} parent=1 // pred_region
      %s28 = ssub.s32 4096, 4096
      %29 = vsyncadd [#allocation6], %s28
      %s30 = sshll.u32 [#allocation5], 4
      %s31 = int_to_ptr.vmem [resolvable:$true] %s30
      %36 = dma.hbm_to_vmem [thread:$0]  %s1, 4096, %s31, [#allocation6], 128, 128, 8
    $region9: #{tpu_custom_call.1} parent=1 // pred_fallthru
      _
    // Predicated region
    $region10: #{tpu_custom_call.1} parent=1 // pred_check
      _
    $region11: #{tpu_custom_call.1} parent=1 // pred_check_branch
      %38 = sbr.rel (0) target = $region13
    $region12: #{tpu_custom_call.1} parent=1 // pred_region
      %s40 = ssub.s32 4096, 4096
      %41 = vsyncadd [#allocation6], %s40
      %s42 = sshll.u32 [#allocation7], 4
      %s43 = int_to_ptr.vmem [resolvable:$true] %s42
      %48 = dma.hbm_to_vmem [thread:$0]  %s2, 4096, %s43, [#allocation6], 128, 128, 8
    $region13: #{tpu_custom_call.1} parent=1 // pred_fallthru
      _
    // Predicated region
    $region14: #{tpu_custom_call.1} parent=1 // pred_check
      _
    $region15: #{tpu_custom_call.1} parent=1 // pred_check_branch
      %50 = sbr.rel (0) target = $region17
    $region16: #{tpu_custom_call.1} parent=1 // pred_region
      %s52 = ssub.s32 128, 128
      %53 = vsyncadd [#allocation9], %s52
      %s55 = sshll.u32 [#allocation8], 4
      %s56 = int_to_ptr.vmem [resolvable:$true] %s55
      %58 = dma.hbm_to_vmem [thread:$0]  %s3, 128, %s56, [#allocation9]
    $region17: #{tpu_custom_call.1} parent=1 // pred_fallthru
      _
    // Predicated region
    $region18: #{tpu_custom_call.1} parent=1 // pred_check
      _
    $region19: #{tpu_custom_call.1} parent=1 // pred_check_branch
      %60 = sbr.rel (0) target = $region21
    $region20: #{tpu_custom_call.1} parent=1 // pred_region
      %61 = dma.done [#allocation3], 2048
    $region21: #{tpu_custom_call.1} parent=1 // pred_fallthru
      _
    // Predicated region
    $region22: #{tpu_custom_call.1} parent=1 // pred_check
      _
    $region23: #{tpu_custom_call.1} parent=1 // pred_check_branch
      %63 = sbr.rel (0) target = $region25
    $region24: #{tpu_custom_call.1} parent=1 // pred_region
      %64 = dma.done [#allocation6], 4096
    $region25: #{tpu_custom_call.1} parent=1 // pred_fallthru
      _
    // Predicated region
    $region26: #{tpu_custom_call.1} parent=1 // pred_check
      _
    $region27: #{tpu_custom_call.1} parent=1 // pred_check_branch
      %66 = sbr.rel (0) target = $region29
    $region28: #{tpu_custom_call.1} parent=1 // pred_region
      %67 = dma.done [#allocation6], 4096
    $region29: #{tpu_custom_call.1} parent=1 // pred_fallthru
      _
    // Predicated region
    $region30: #{tpu_custom_call.1} parent=1 // pred_check
      _
    $region31: #{tpu_custom_call.1} parent=1 // pred_check_branch
      %69 = sbr.rel (0) target = $region33
    $region32: #{tpu_custom_call.1} parent=1 // pred_region
      %70 = dma.done [#allocation9], 128
    $region33: #{tpu_custom_call.1} parent=1 // pred_fallthru
      _
    %v72 = vld [vmem:[#allocation2] sm:$0xff]
    %v73 = vld [vmem:[#allocation2 + $0x8] sm:$0xff]
    %v74 = vld [vmem:[#allocation2 + $0x10] sm:$0xff]
    %v75 = vld [vmem:[#allocation2 + $0x18] sm:$0xff]
    %v76 = vld [vmem:[#allocation2 + $0x20] sm:$0xff]
    %v77 = vld [vmem:[#allocation2 + $0x28] sm:$0xff]
    %v78 = vld [vmem:[#allocation2 + $0x30] sm:$0xff]
    %v79 = vld [vmem:[#allocation2 + $0x38] sm:$0xff]
    %v80 = vld [vmem:[#allocation2 + $0x40] sm:$0xff]
    %v81 = vld [vmem:[#allocation2 + $0x48] sm:$0xff]
    %v82 = vld [vmem:[#allocation2 + $0x50] sm:$0xff]
    %v83 = vld [vmem:[#allocation2 + $0x58] sm:$0xff]
    %v84 = vld [vmem:[#allocation2 + $0x60] sm:$0xff]
    %v85 = vld [vmem:[#allocation2 + $0x68] sm:$0xff]
    %v86 = vld [vmem:[#allocation2 + $0x70] sm:$0xff]
    %v87 = vld [vmem:[#allocation2 + $0x78] sm:$0xff]
    %v88 = vmul.f32 %v72, %v73
    %v89 = vmul.f32 %v74, %v75
    %v90 = vmul.f32 %v76, %v77
    %v91 = vmul.f32 %v78, %v79
    %v92 = vmul.f32 %v80, %v81
    %v93 = vmul.f32 %v82, %v83
    %v94 = vmul.f32 %v84, %v85
    %v95 = vmul.f32 %v86, %v87
    %v96 = vadd.f32 %v88, %v89
    %v97 = vadd.f32 %v96, %v90
    %v98 = vadd.f32 %v97, %v91
    %v99 = vrot.slane %v98, 4
    %v100 = vadd.f32 %v98, %v99
    %v101 = vrot.slane %v100, 2
    %v102 = vadd.f32 %v100, %v101
    %v103 = vrot.slane %v102, 1
    %v104 = vadd.f32 %v102, %v103
    %v105 = vadd.f32 %v92, %v93
    %v106 = vadd.f32 %v105, %v94
    %v107 = vadd.f32 %v106, %v95
    %v108 = vrot.slane %v107, 4
    %v109 = vadd.f32 %v107, %v108
    %v110 = vrot.slane %v109, 2
    %v111 = vadd.f32 %v109, %v110
    %v112 = vrot.slane %v111, 1
    %v113 = vadd.f32 %v111, %v112
    %v114 = vmul.f32 %v72, %v72
    %v115 = vmul.f32 %v74, %v74
    %v116 = vmul.f32 %v76, %v76
    %v117 = vmul.f32 %v78, %v78
    %v118 = vmul.f32 %v80, %v80
    %v119 = vmul.f32 %v82, %v82
    %v120 = vmul.f32 %v84, %v84
    %v121 = vmul.f32 %v86, %v86
    %v122 = vadd.f32 %v114, %v115
    %v123 = vadd.f32 %v122, %v116
    %v124 = vadd.f32 %v123, %v117
    %v125 = vrot.slane %v124, 4
    %v126 = vadd.f32 %v124, %v125
    %v127 = vrot.slane %v126, 2
    %v128 = vadd.f32 %v126, %v127
    %v129 = vrot.slane %v128, 1
    %v130 = vadd.f32 %v128, %v129
    %v131 = vadd.f32 %v118, %v119
    %v132 = vadd.f32 %v131, %v120
    %v133 = vadd.f32 %v132, %v121
    %v134 = vrot.slane %v133, 4
    %v135 = vadd.f32 %v133, %v134
    %v136 = vrot.slane %v135, 2
    %v137 = vadd.f32 %v135, %v136
    %v138 = vrot.slane %v137, 1
    %v139 = vadd.f32 %v137, %v138
    %v140 = vmul.f32 %v73, %v73
    %v141 = vmul.f32 %v75, %v75
    %v142 = vmul.f32 %v77, %v77
    %v143 = vmul.f32 %v79, %v79
    %v144 = vmul.f32 %v81, %v81
    %v145 = vmul.f32 %v83, %v83
    %v146 = vmul.f32 %v85, %v85
    %v147 = vmul.f32 %v87, %v87
    %v148 = vadd.f32 %v140, %v141
    %v149 = vadd.f32 %v148, %v142
    %v150 = vadd.f32 %v149, %v143
    %v151 = vrot.slane %v150, 4
    %v152 = vadd.f32 %v150, %v151
    %v153 = vrot.slane %v152, 2
    %v154 = vadd.f32 %v152, %v153
    %v155 = vrot.slane %v154, 1
    %v156 = vadd.f32 %v154, %v155
    %v157 = vadd.f32 %v144, %v145
    %v158 = vadd.f32 %v157, %v146
    %v159 = vadd.f32 %v158, %v147
    %v160 = vrot.slane %v159, 4
    %v161 = vadd.f32 %v159, %v160
    %v162 = vrot.slane %v161, 2
    %v163 = vadd.f32 %v161, %v162
    %v164 = vrot.slane %v163, 1
    %v165 = vadd.f32 %v163, %v164
    %v166 = vmax.f32 %v130, 1e-24
    %v167 = vmax.f32 %v139, 1e-24
    %v168 = vmax.f32 %v156, 1e-24
    %v169 = vmax.f32 %v165, 1e-24
    %v170 = vmul.f32 %v166, %v168
    %v171 = vmul.f32 %v167, %v169
    %v172 = vmax.f32 %v170, 1e-30
    %v173 = vmax.f32 %v171, 1e-30
    %v174 = vrsqrt.pop %v172
    %v175 = vrsqrt.pop %v173
    %v176 = vmul.f32 %v104, %v174
    %v177 = vmul.f32 %v113, %v175
    %v178 = vxor.u32 %v176, 2147483648
    %v179 = vxor.u32 %v177, 2147483648
    %v180 = vmul.f32 %v178, 1.442695
    %v181 = vpow.pop %v180
    %v182 = vmul.f32 %v179, 1.442695
    %v183 = vpow.pop %v182
    %v184 = vadd.f32 %v181, 1.0
    %v185 = vadd.f32 %v183, 1.0
    %v186 = vrcp.pop %v184
    %v187 = vmul.f32 1.0, %v186
    %v188 = vrcp.pop %v185
    %v189 = vmul.f32 1.0, %v188
    %v190 = vsub.f32 1.0, %v187
    %v191 = vsub.f32 1.0, %v189
    %v192 = vpack.c.bf16 %v74, %v72
    %v193 = vpack.c.bf16 %v75, %v73
    %v194 = vpack.c.bf16 %v78, %v76
    %v195 = vpack.c.bf16 %v79, %v77
    %v196 = vpack.c.bf16 %v82, %v80
    %v197 = vpack.c.bf16 %v83, %v81
    %v198 = vpack.c.bf16 %v86, %v84
    %v199 = vpack.c.bf16 %v87, %v85
    %v200 = vld [vmem:[#allocation5] sm:$0xf]
    %v201 = vld [vmem:[#allocation5 + $0x8] sm:$0xf]
    %v202 = vld [vmem:[#allocation5 + $0x10] sm:$0xf]
    %v203 = vld [vmem:[#allocation5 + $0x18] sm:$0xf]
    %v204 = vld [vmem:[#allocation5 + $0x20] sm:$0xf]
    %v205 = vld [vmem:[#allocation5 + $0x28] sm:$0xf]
    %v206 = vld [vmem:[#allocation5 + $0x30] sm:$0xf]
    %v207 = vld [vmem:[#allocation5 + $0x38] sm:$0xf]
    %v208 = vld [vmem:[#allocation5 + $0x40] sm:$0xf]
    %v209 = vld [vmem:[#allocation5 + $0x48] sm:$0xf]
    %v210 = vld [vmem:[#allocation5 + $0x50] sm:$0xf]
    %v211 = vld [vmem:[#allocation5 + $0x58] sm:$0xf]
    %v212 = vld [vmem:[#allocation5 + $0x60] sm:$0xf]
    %v213 = vld [vmem:[#allocation5 + $0x68] sm:$0xf]
    %v214 = vld [vmem:[#allocation5 + $0x70] sm:$0xf]
    %v215 = vld [vmem:[#allocation5 + $0x78] sm:$0xf]
    %v216 = vld [vmem:[#allocation5 + $0x80] sm:$0xf]
    %v217 = vld [vmem:[#allocation5 + $0x88] sm:$0xf]
    %v218 = vld [vmem:[#allocation5 + $0x90] sm:$0xf]
    %v219 = vld [vmem:[#allocation5 + $0x98] sm:$0xf]
    %v220 = vld [vmem:[#allocation5 + $0xa0] sm:$0xf]
    %v221 = vld [vmem:[#allocation5 + $0xa8] sm:$0xf]
    %v222 = vld [vmem:[#allocation5 + $0xb0] sm:$0xf]
    %v223 = vld [vmem:[#allocation5 + $0xb8] sm:$0xf]
    %v224 = vld [vmem:[#allocation5 + $0xc0] sm:$0xf]
    %v225 = vld [vmem:[#allocation5 + $0xc8] sm:$0xf]
    %v226 = vld [vmem:[#allocation5 + $0xd0] sm:$0xf]
    %v227 = vld [vmem:[#allocation5 + $0xd8] sm:$0xf]
    %v228 = vld [vmem:[#allocation5 + $0xe0] sm:$0xf]
    %v229 = vld [vmem:[#allocation5 + $0xe8] sm:$0xf]
    %v230 = vld [vmem:[#allocation5 + $0xf0] sm:$0xf]
    %v231 = vld [vmem:[#allocation5 + $0xf8] sm:$0xf]
    %v232 = vld [vmem:[#allocation8] sm:$0x1]
    %v233 = vlaneseq
    %v234 = vshrl.u32 %v233, 7
    %v235 = vsub.s32 0, %v234
    %v236 = vrot.slane %v232, %v235
    %v269 = vunpack.c.l.b16 %v200
    %v270 = vunpack.c.l.b16 %v201
    %v271 = vunpack.c.l.b16 %v202
    %v272 = vunpack.c.l.b16 %v203
    %v273 = vunpack.c.l.b16 %v204
    %v274 = vunpack.c.l.b16 %v205
    %v275 = vunpack.c.l.b16 %v206
    %v276 = vunpack.c.l.b16 %v207
    %v277 = vunpack.c.l.b16 %v208
    %v278 = vunpack.c.l.b16 %v209
    %v279 = vunpack.c.l.b16 %v210
    %v280 = vunpack.c.l.b16 %v211
    %v281 = vunpack.c.l.b16 %v212
    %v282 = vunpack.c.l.b16 %v213
    %v283 = vunpack.c.l.b16 %v214
    %v284 = vunpack.c.l.b16 %v215
    %v285 = vunpack.c.l.b16 %v216
    %v286 = vunpack.c.l.b16 %v217
    %v287 = vunpack.c.l.b16 %v218
    %v288 = vunpack.c.l.b16 %v219
    %v289 = vunpack.c.l.b16 %v220
    %v290 = vunpack.c.l.b16 %v221
    %v291 = vunpack.c.l.b16 %v222
    %v292 = vunpack.c.l.b16 %v223
    %v293 = vunpack.c.l.b16 %v224
    %v294 = vunpack.c.l.b16 %v225
    %v295 = vunpack.c.l.b16 %v226
    %v296 = vunpack.c.l.b16 %v227
    %v297 = vunpack.c.l.b16 %v228
    %v298 = vunpack.c.l.b16 %v229
    %v299 = vunpack.c.l.b16 %v230
    %v300 = vunpack.c.l.b16 %v231
    %v301 = vpack.c.b16 %v270, %v269
    %v302 = vpack.c.b16 %v272, %v271
    %v303 = vpack.c.b16 %v274, %v273
    %v304 = vpack.c.b16 %v276, %v275
    %v305 = vpack.c.b16 %v278, %v277
    %v306 = vpack.c.b16 %v280, %v279
    %v307 = vpack.c.b16 %v282, %v281
    %v308 = vpack.c.b16 %v284, %v283
    %v309 = vpack.c.b16 %v286, %v285
    %v310 = vpack.c.b16 %v288, %v287
    %v311 = vpack.c.b16 %v290, %v289
    %v312 = vpack.c.b16 %v292, %v291
    %v313 = vpack.c.b16 %v294, %v293
    %v314 = vpack.c.b16 %v296, %v295
    %v315 = vpack.c.b16 %v298, %v297
    %v316 = vpack.c.b16 %v300, %v299
    %333 = vmatprep.subr.bf16.mxu0 0
    %334 = vmatpush1.bf16.msra.mxu0 %v308
    %335 = vmatprep.subr.bf16.mxu0 0
    %336 = vmatpush1.bf16.msra.mxu0 %v307
    %337 = vmatprep.subr.bf16.mxu0 0
    %338 = vmatpush1.bf16.msra.mxu0 %v306
    %339 = vmatprep.subr.bf16.mxu0 0
    %340 = vmatpush1.bf16.msra.mxu0 %v305
    %341 = vmatprep.subr.bf16.mxu0 0
    %342 = vmatpush1.bf16.msra.mxu0 %v304
    %343 = vmatprep.subr.bf16.mxu0 0
    %344 = vmatpush1.bf16.msra.mxu0 %v303
    %345 = vmatprep.subr.bf16.mxu0 0
    %346 = vmatpush1.bf16.msra.mxu0 %v302
    %347 = vmatprep.subr.bf16.mxu0 0
    %348 = vmatpush1.bf16.msra.mxu0 %v301
    %349 = vmatprep.subr.bf16.mxu0 0
    %350 = vmatpush2.bf16.msra.mxu0 %v316
    %351 = vmatprep.subr.bf16.mxu0 0
    %352 = vmatpush2.bf16.msra.mxu0 %v315
    %353 = vmatprep.subr.bf16.mxu0 0
    %354 = vmatpush2.bf16.msra.mxu0 %v314
    %355 = vmatprep.subr.bf16.mxu0 0
    %356 = vmatpush2.bf16.msra.mxu0 %v313
    %357 = vmatprep.subr.bf16.mxu0 0
    %358 = vmatpush2.bf16.msra.mxu0 %v312
    %359 = vmatprep.subr.bf16.mxu0 0
    %360 = vmatpush2.bf16.msra.mxu0 %v311
    %361 = vmatprep.subr.bf16.mxu0 0
    %362 = vmatpush2.bf16.msra.mxu0 %v310
    %363 = vmatprep.subr.bf16.mxu0 0
    %364 = vmatpush2.bf16.msra.mxu0 %v309
    %365 = vmatprep.mubr.bf16.mxu0 %v193
    %366 = vmatmul.mubr.bf16.gmra.mxu0 %v192
    %v367 = vpop.f32.mrf.mxu0
    %v368 = vadd.f32 %v236, %v367
    %v369 = vpop.f32.mrf.mxu0
    %v370 = vpop.f32.mrf.mxu0
    %v371 = vadd.f32 %v236, %v370
    %v372 = vpop.f32.mrf.mxu0
    %373 = vmatprep.mubr.bf16.mxu0 %v195
    %374 = vmatmul.mubr.bf16.gmra.mxu0 %v194
    %v375 = vpop.f32.mrf.mxu0
    %v376 = vadd.f32 %v236, %v375
    %v377 = vpop.f32.mrf.mxu0
    %v378 = vpop.f32.mrf.mxu0
    %v379 = vadd.f32 %v236, %v378
    %v380 = vpop.f32.mrf.mxu0
    %381 = vmatprep.mubr.bf16.mxu0 %v197
    %382 = vmatmul.mubr.bf16.gmra.mxu0 %v196
    %v383 = vpop.f32.mrf.mxu0
    %v384 = vadd.f32 %v236, %v383
    %v385 = vpop.f32.mrf.mxu0
    %v386 = vpop.f32.mrf.mxu0
    %v387 = vadd.f32 %v236, %v386
    %v388 = vpop.f32.mrf.mxu0
    %389 = vmatprep.mubr.bf16.mxu0 %v199
    %390 = vmatmul.mubr.bf16.gmra.mxu0 %v198
    %v391 = vpop.f32.mrf.mxu0
    %v392 = vadd.f32 %v236, %v391
    %v393 = vpop.f32.mrf.mxu0
    %v394 = vpop.f32.mrf.mxu0
    %v395 = vadd.f32 %v236, %v394
    %v396 = vpop.f32.mrf.mxu0
    %397 = vdwg.mxu0
    %v398 = vmax.f32 %v368, 0.0
    %v399 = vmax.f32 %v371, 0.0
    %v400 = vmax.f32 %v376, 0.0
    %v401 = vmax.f32 %v379, 0.0
    %v402 = vmax.f32 %v384, 0.0
    %v403 = vmax.f32 %v387, 0.0
    %v404 = vmax.f32 %v392, 0.0
    %v405 = vmax.f32 %v395, 0.0
    %v406 = vpack.c.bf16 %v399, %v398
    %v407 = vpack.c.bf16 %v401, %v400
    %v408 = vpack.c.bf16 %v403, %v402
    %v409 = vpack.c.bf16 %v405, %v404
    %v410 = vld [vmem:[#allocation7] sm:$0xff]
    %v411 = vld [vmem:[#allocation7 + $0x8] sm:$0xff]
    %v412 = vld [vmem:[#allocation7 + $0x10] sm:$0xff]
    %v413 = vld [vmem:[#allocation7 + $0x18] sm:$0xff]
    %v414 = vld [vmem:[#allocation7 + $0x20] sm:$0xff]
    %v415 = vld [vmem:[#allocation7 + $0x28] sm:$0xff]
    %v416 = vld [vmem:[#allocation7 + $0x30] sm:$0xff]
    %v417 = vld [vmem:[#allocation7 + $0x38] sm:$0xff]
    %v418 = vld [vmem:[#allocation7 + $0x40] sm:$0xff]
    %v419 = vld [vmem:[#allocation7 + $0x48] sm:$0xff]
    %v420 = vld [vmem:[#allocation7 + $0x50] sm:$0xff]
    %v421 = vld [vmem:[#allocation7 + $0x58] sm:$0xff]
    %v422 = vld [vmem:[#allocation7 + $0x60] sm:$0xff]
    %v423 = vld [vmem:[#allocation7 + $0x68] sm:$0xff]
    %v424 = vld [vmem:[#allocation7 + $0x70] sm:$0xff]
    %v425 = vld [vmem:[#allocation7 + $0x78] sm:$0xff]
    %s426 = scalar_lea.vmem [#allocation8], 2
    %v427 = vld [vmem:[%s426] ss:$4 sm:$0x3]
    %v429 = vlaneseq
    %v430 = vshrl.u32 %v429, 7
    %v431 = vsub.s32 0, %v430
    %v432 = vrot.slane %v427, %v431
    %v433 = vlaneseq
    %v434 = vshrl.u32 %v433, 7
    %v435 = vsub.s32 1, %v434
    %v436 = vrot.slane %v427, %v435
    %v455 = vunpack.c.l.b16 %v410
    %v456 = vunpack.c.h.b16 %v410
    %v457 = vunpack.c.l.b16 %v411
    %v458 = vunpack.c.h.b16 %v411
    %v459 = vunpack.c.l.b16 %v412
    %v460 = vunpack.c.h.b16 %v412
    %v461 = vunpack.c.l.b16 %v413
    %v462 = vunpack.c.h.b16 %v413
    %v463 = vunpack.c.l.b16 %v414
    %v464 = vunpack.c.h.b16 %v414
    %v465 = vunpack.c.l.b16 %v415
    %v466 = vunpack.c.h.b16 %v415
    %v467 = vunpack.c.l.b16 %v416
    %v468 = vunpack.c.h.b16 %v416
    %v469 = vunpack.c.l.b16 %v417
    %v470 = vunpack.c.h.b16 %v417
    %v471 = vunpack.c.l.b16 %v418
    %v472 = vunpack.c.h.b16 %v418
    %v473 = vunpack.c.l.b16 %v419
    %v474 = vunpack.c.h.b16 %v419
    %v475 = vunpack.c.l.b16 %v420
    %v476 = vunpack.c.h.b16 %v420
    %v477 = vunpack.c.l.b16 %v421
    %v478 = vunpack.c.h.b16 %v421
    %v479 = vunpack.c.l.b16 %v422
    %v480 = vunpack.c.h.b16 %v422
    %v481 = vunpack.c.l.b16 %v423
    %v482 = vunpack.c.h.b16 %v423
    %v483 = vunpack.c.l.b16 %v424
    %v484 = vunpack.c.h.b16 %v424
    %v485 = vunpack.c.l.b16 %v425
    %v486 = vunpack.c.h.b16 %v425
    %v487 = vpack.c.b16 %v457, %v455
    %v488 = vpack.c.b16 %v458, %v456
    %v489 = vpack.c.b16 %v461, %v459
    %v490 = vpack.c.b16 %v462, %v460
    %v491 = vpack.c.b16 %v465, %v463
    %v492 = vpack.c.b16 %v466, %v464
    %v493 = vpack.c.b16 %v469, %v467
    %v494 = vpack.c.b16 %v470, %v468
    %v495 = vpack.c.b16 %v473, %v471
    %v496 = vpack.c.b16 %v474, %v472
    %v497 = vpack.c.b16 %v477, %v475
    %v498 = vpack.c.b16 %v478, %v476
    %v499 = vpack.c.b16 %v481, %v479
    %v500 = vpack.c.b16 %v482, %v480
    %v501 = vpack.c.b16 %v485, %v483
    %v502 = vpack.c.b16 %v486, %v484
    %519 = vmatprep.subr.bf16.mxu0 %v502
    %520 = vmatpush1.bf16.msra.mxu0 %v501
    %521 = vmatprep.subr.bf16.mxu0 %v500
    %522 = vmatpush1.bf16.msra.mxu0 %v499
    %523 = vmatprep.subr.bf16.mxu0 %v498
    %524 = vmatpush1.bf16.msra.mxu0 %v497
    %525 = vmatprep.subr.bf16.mxu0 %v496
    %526 = vmatpush1.bf16.msra.mxu0 %v495
    %527 = vmatprep.subr.bf16.mxu0 %v494
    %528 = vmatpush1.bf16.msra.mxu0 %v493
    %529 = vmatprep.subr.bf16.mxu0 %v492
    %530 = vmatpush1.bf16.msra.mxu0 %v491
    %531 = vmatprep.subr.bf16.mxu0 %v490
    %532 = vmatpush1.bf16.msra.mxu0 %v489
    %533 = vmatprep.subr.bf16.mxu0 %v488
    %534 = vmatpush1.bf16.msra.mxu0 %v487
    %535 = vmatprep.subr.bf16.mxu0 0
    %536 = vmatpush2.bf16.msra.mxu0 0
    %537 = vmatprep.subr.bf16.mxu0 0
    %538 = vmatpush2.bf16.msra.mxu0 0
    %539 = vmatprep.subr.bf16.mxu0 0
    %540 = vmatpush2.bf16.msra.mxu0 0
    %541 = vmatprep.subr.bf16.mxu0 0
    %542 = vmatpush2.bf16.msra.mxu0 0
    %543 = vmatprep.subr.bf16.mxu0 0
    %544 = vmatpush2.bf16.msra.mxu0 0
    %545 = vmatprep.subr.bf16.mxu0 0
    %546 = vmatpush2.bf16.msra.mxu0 0
    %547 = vmatprep.subr.bf16.mxu0 0
    %548 = vmatpush2.bf16.msra.mxu0 0
    %549 = vmatprep.subr.bf16.mxu0 0
    %550 = vmatpush2.bf16.msra.mxu0 0
    %551 = vmatprep.mubr.bf16.mxu0 0
    %552 = vmatmul.mubr.bf16.gmra.mxu0 %v406
    %v553 = vpop.f32.mrf.mxu0
    %v554 = vadd.f32 %v432, %v553
    %v555 = vpop.f32.mrf.mxu0
    %v556 = vadd.f32 %v436, %v555
    %v557 = vpop.f32.mrf.mxu0
    %v558 = vadd.f32 %v432, %v557
    %v559 = vpop.f32.mrf.mxu0
    %v560 = vadd.f32 %v436, %v559
    %561 = vmatprep.mubr.bf16.mxu0 0
    %562 = vmatmul.mubr.bf16.gmra.mxu0 %v407
    %v563 = vpop.f32.mrf.mxu0
    %v564 = vadd.f32 %v432, %v563
    %v565 = vpop.f32.mrf.mxu0
    %v566 = vadd.f32 %v436, %v565
    %v567 = vpop.f32.mrf.mxu0
    %v568 = vadd.f32 %v432, %v567
    %v569 = vpop.f32.mrf.mxu0
    %v570 = vadd.f32 %v436, %v569
    %571 = vmatprep.mubr.bf16.mxu0 0
    %572 = vmatmul.mubr.bf16.gmra.mxu0 %v408
    %v573 = vpop.f32.mrf.mxu0
    %v574 = vadd.f32 %v432, %v573
    %v575 = vpop.f32.mrf.mxu0
    %v576 = vadd.f32 %v436, %v575
    %v577 = vpop.f32.mrf.mxu0
    %v578 = vadd.f32 %v432, %v577
    %v579 = vpop.f32.mrf.mxu0
    %v580 = vadd.f32 %v436, %v579
    %581 = vmatprep.mubr.bf16.mxu0 0
    %582 = vmatmul.mubr.bf16.gmra.mxu0 %v409
    %v583 = vpop.f32.mrf.mxu0
    %v584 = vadd.f32 %v432, %v583
    %v585 = vpop.f32.mrf.mxu0
    %v586 = vadd.f32 %v436, %v585
    %v587 = vpop.f32.mrf.mxu0
    %v588 = vadd.f32 %v432, %v587
    %v589 = vpop.f32.mrf.mxu0
    %v590 = vadd.f32 %v436, %v589
    %591 = vdwg.mxu0
    %v592 = vmax.f32 %v554, 0.0
    %v593 = vmax.f32 %v556, 0.0
    %v594 = vmax.f32 %v558, 0.0
    %v595 = vmax.f32 %v560, 0.0
    %v596 = vmax.f32 %v564, 0.0
    %v597 = vmax.f32 %v566, 0.0
    %v598 = vmax.f32 %v568, 0.0
    %v599 = vmax.f32 %v570, 0.0
    %v600 = vmax.f32 %v574, 0.0
    %v601 = vmax.f32 %v576, 0.0
    %v602 = vmax.f32 %v578, 0.0
    %v603 = vmax.f32 %v580, 0.0
    %v604 = vmax.f32 %v584, 0.0
    %v605 = vmax.f32 %v586, 0.0
    %v606 = vmax.f32 %v588, 0.0
    %v607 = vmax.f32 %v590, 0.0
    %v608 = vlaneseq
    %v609 = vshrl.u32 %v608, 7
    %v610 = vsub.s32 0, %v609
    %v611 = vrot.slane %v190, %v610
    %v612 = vlaneseq
    %v613 = vshrl.u32 %v612, 7
    %v614 = vsub.s32 0, %v613
    %v615 = vrot.slane %v191, %v614
    %v616 = vmul.f32 %v611, %v592
    %v617 = vmul.f32 %v611, %v593
    %v618 = vmul.f32 %v611, %v594
    %v619 = vmul.f32 %v611, %v595
    %v620 = vmul.f32 %v611, %v596
    %v621 = vmul.f32 %v611, %v597
    %v622 = vmul.f32 %v611, %v598
    %v623 = vmul.f32 %v611, %v599
    %v624 = vmul.f32 %v615, %v600
    %v625 = vmul.f32 %v615, %v601
    %v626 = vmul.f32 %v615, %v602
    %v627 = vmul.f32 %v615, %v603
    %v628 = vmul.f32 %v615, %v604
    %v629 = vmul.f32 %v615, %v605
    %v630 = vmul.f32 %v615, %v606
    %v631 = vmul.f32 %v615, %v607
    %v632 = vpack.c.bf16 %v618, %v616
    %v633 = vpack.c.bf16 %v619, %v617
    %v634 = vpack.c.bf16 %v622, %v620
    %v635 = vpack.c.bf16 %v623, %v621
    %v636 = vpack.c.bf16 %v626, %v624
    %v637 = vpack.c.bf16 %v627, %v625
    %v638 = vpack.c.bf16 %v630, %v628
    %v639 = vpack.c.bf16 %v631, %v629
    %v640 = vld [vmem:[#allocation5 + $0x4] sm:$0xf]
    %v641 = vld [vmem:[#allocation5 + $0xc] sm:$0xf]
    %v642 = vld [vmem:[#allocation5 + $0x14] sm:$0xf]
    %v643 = vld [vmem:[#allocation5 + $0x1c] sm:$0xf]
    %v644 = vld [vmem:[#allocation5 + $0x24] sm:$0xf]
    %v645 = vld [vmem:[#allocation5 + $0x2c] sm:$0xf]
    %v646 = vld [vmem:[#allocation5 + $0x34] sm:$0xf]
    %v647 = vld [vmem:[#allocation5 + $0x3c] sm:$0xf]
    %v648 = vld [vmem:[#allocation5 + $0x44] sm:$0xf]
    %v649 = vld [vmem:[#allocation5 + $0x4c] sm:$0xf]
    %v650 = vld [vmem:[#allocation5 + $0x54] sm:$0xf]
    %v651 = vld [vmem:[#allocation5 + $0x5c] sm:$0xf]
    %v652 = vld [vmem:[#allocation5 + $0x64] sm:$0xf]
    %v653 = vld [vmem:[#allocation5 + $0x6c] sm:$0xf]
    %v654 = vld [vmem:[#allocation5 + $0x74] sm:$0xf]
    %v655 = vld [vmem:[#allocation5 + $0x7c] sm:$0xf]
    %v656 = vld [vmem:[#allocation5 + $0x84] sm:$0xf]
    %v657 = vld [vmem:[#allocation5 + $0x8c] sm:$0xf]
    %v658 = vld [vmem:[#allocation5 + $0x94] sm:$0xf]
    %v659 = vld [vmem:[#allocation5 + $0x9c] sm:$0xf]
    %v660 = vld [vmem:[#allocation5 + $0xa4] sm:$0xf]
    %v661 = vld [vmem:[#allocation5 + $0xac] sm:$0xf]
    %v662 = vld [vmem:[#allocation5 + $0xb4] sm:$0xf]
    %v663 = vld [vmem:[#allocation5 + $0xbc] sm:$0xf]
    %v664 = vld [vmem:[#allocation5 + $0xc4] sm:$0xf]
    %v665 = vld [vmem:[#allocation5 + $0xcc] sm:$0xf]
    %v666 = vld [vmem:[#allocation5 + $0xd4] sm:$0xf]
    %v667 = vld [vmem:[#allocation5 + $0xdc] sm:$0xf]
    %v668 = vld [vmem:[#allocation5 + $0xe4] sm:$0xf]
    %v669 = vld [vmem:[#allocation5 + $0xec] sm:$0xf]
    %v670 = vld [vmem:[#allocation5 + $0xf4] sm:$0xf]
    %v671 = vld [vmem:[#allocation5 + $0xfc] sm:$0xf]
    %v672 = vld [vmem:[#allocation8 + $0x1] sm:$0x1]
    %v673 = vlaneseq
    %v674 = vshrl.u32 %v673, 7
    %v675 = vsub.s32 0, %v674
    %v676 = vrot.slane %v672, %v675
    %v709 = vunpack.c.l.b16 %v640
    %v710 = vunpack.c.l.b16 %v641
    %v711 = vunpack.c.l.b16 %v642
    %v712 = vunpack.c.l.b16 %v643
    %v713 = vunpack.c.l.b16 %v644
    %v714 = vunpack.c.l.b16 %v645
    %v715 = vunpack.c.l.b16 %v646
    %v716 = vunpack.c.l.b16 %v647
    %v717 = vunpack.c.l.b16 %v648
    %v718 = vunpack.c.l.b16 %v649
    %v719 = vunpack.c.l.b16 %v650
    %v720 = vunpack.c.l.b16 %v651
    %v721 = vunpack.c.l.b16 %v652
    %v722 = vunpack.c.l.b16 %v653
    %v723 = vunpack.c.l.b16 %v654
    %v724 = vunpack.c.l.b16 %v655
    %v725 = vunpack.c.l.b16 %v656
    %v726 = vunpack.c.l.b16 %v657
    %v727 = vunpack.c.l.b16 %v658
    %v728 = vunpack.c.l.b16 %v659
    %v729 = vunpack.c.l.b16 %v660
    %v730 = vunpack.c.l.b16 %v661
    %v731 = vunpack.c.l.b16 %v662
    %v732 = vunpack.c.l.b16 %v663
    %v733 = vunpack.c.l.b16 %v664
    %v734 = vunpack.c.l.b16 %v665
    %v735 = vunpack.c.l.b16 %v666
    %v736 = vunpack.c.l.b16 %v667
    %v737 = vunpack.c.l.b16 %v668
    %v738 = vunpack.c.l.b16 %v669
    %v739 = vunpack.c.l.b16 %v670
    %v740 = vunpack.c.l.b16 %v671
    %v741 = vpack.c.b16 %v710, %v709
    %v742 = vpack.c.b16 %v712, %v711
    %v743 = vpack.c.b16 %v714, %v713
    %v744 = vpack.c.b16 %v716, %v715
    %v745 = vpack.c.b16 %v718, %v717
    %v746 = vpack.c.b16 %v720, %v719
    %v747 = vpack.c.b16 %v722, %v721
    %v748 = vpack.c.b16 %v724, %v723
    %v749 = vpack.c.b16 %v726, %v725
    %v750 = vpack.c.b16 %v728, %v727
    %v751 = vpack.c.b16 %v730, %v729
    %v752 = vpack.c.b16 %v732, %v731
    %v753 = vpack.c.b16 %v734, %v733
    %v754 = vpack.c.b16 %v736, %v735
    %v755 = vpack.c.b16 %v738, %v737
    %v756 = vpack.c.b16 %v740, %v739
    %773 = vmatprep.subr.bf16.mxu0 0
    %774 = vmatpush1.bf16.msra.mxu0 %v748
    %775 = vmatprep.subr.bf16.mxu0 0
    %776 = vmatpush1.bf16.msra.mxu0 %v747
    %777 = vmatprep.subr.bf16.mxu0 0
    %778 = vmatpush1.bf16.msra.mxu0 %v746
    %779 = vmatprep.subr.bf16.mxu0 0
    %780 = vmatpush1.bf16.msra.mxu0 %v745
    %781 = vmatprep.subr.bf16.mxu0 0
    %782 = vmatpush1.bf16.msra.mxu0 %v744
    %783 = vmatprep.subr.bf16.mxu0 0
    %784 = vmatpush1.bf16.msra.mxu0 %v743
    %785 = vmatprep.subr.bf16.mxu0 0
    %786 = vmatpush1.bf16.msra.mxu0 %v742
    %787 = vmatprep.subr.bf16.mxu0 0
    %788 = vmatpush1.bf16.msra.mxu0 %v741
    %789 = vmatprep.subr.bf16.mxu0 0
    %790 = vmatpush2.bf16.msra.mxu0 %v756
    %791 = vmatprep.subr.bf16.mxu0 0
    %792 = vmatpush2.bf16.msra.mxu0 %v755
    %793 = vmatprep.subr.bf16.mxu0 0
    %794 = vmatpush2.bf16.msra.mxu0 %v754
    %795 = vmatprep.subr.bf16.mxu0 0
    %796 = vmatpush2.bf16.msra.mxu0 %v753
    %797 = vmatprep.subr.bf16.mxu0 0
    %798 = vmatpush2.bf16.msra.mxu0 %v752
    %799 = vmatprep.subr.bf16.mxu0 0
    %800 = vmatpush2.bf16.msra.mxu0 %v751
    %801 = vmatprep.subr.bf16.mxu0 0
    %802 = vmatpush2.bf16.msra.mxu0 %v750
    %803 = vmatprep.subr.bf16.mxu0 0
    %804 = vmatpush2.bf16.msra.mxu0 %v749
    %805 = vmatprep.mubr.bf16.mxu0 %v633
    %806 = vmatmul.mubr.bf16.gmra.mxu0 %v632
    %v807 = vpop.f32.mrf.mxu0
    %v808 = vadd.f32 %v676, %v807
    %v809 = vpop.f32.mrf.mxu0
    %v810 = vpop.f32.mrf.mxu0
    %v811 = vadd.f32 %v676, %v810
    %v812 = vpop.f32.mrf.mxu0
    %813 = vmatprep.mubr.bf16.mxu0 %v635
    %814 = vmatmul.mubr.bf16.gmra.mxu0 %v634
    %v815 = vpop.f32.mrf.mxu0
    %v816 = vadd.f32 %v676, %v815
    %v817 = vpop.f32.mrf.mxu0
    %v818 = vpop.f32.mrf.mxu0
    %v819 = vadd.f32 %v676, %v818
    %v820 = vpop.f32.mrf.mxu0
    %821 = vmatprep.mubr.bf16.mxu0 %v637
    %822 = vmatmul.mubr.bf16.gmra.mxu0 %v636
    %v823 = vpop.f32.mrf.mxu0
    %v824 = vadd.f32 %v676, %v823
    %v825 = vpop.f32.mrf.mxu0
    %v826 = vpop.f32.mrf.mxu0
    %v827 = vadd.f32 %v676, %v826
    %v828 = vpop.f32.mrf.mxu0
    %829 = vmatprep.mubr.bf16.mxu0 %v639
    %830 = vmatmul.mubr.bf16.gmra.mxu0 %v638
    %v831 = vpop.f32.mrf.mxu0
    %v832 = vadd.f32 %v676, %v831
    %v833 = vpop.f32.mrf.mxu0
    %v834 = vpop.f32.mrf.mxu0
    %v835 = vadd.f32 %v676, %v834
    %v836 = vpop.f32.mrf.mxu0
    %837 = vdwg.mxu0
    %v838 = vmax.f32 %v808, 0.0
    %v839 = vmax.f32 %v811, 0.0
    %v840 = vmax.f32 %v816, 0.0
    %v841 = vmax.f32 %v819, 0.0
    %v842 = vmax.f32 %v824, 0.0
    %v843 = vmax.f32 %v827, 0.0
    %v844 = vmax.f32 %v832, 0.0
    %v845 = vmax.f32 %v835, 0.0
    %v846 = vpack.c.bf16 %v839, %v838
    %v847 = vpack.c.bf16 %v841, %v840
    %v848 = vpack.c.bf16 %v843, %v842
    %v849 = vpack.c.bf16 %v845, %v844
    %v850 = vld [vmem:[#allocation7 + $0x80] sm:$0xff]
    %v851 = vld [vmem:[#allocation7 + $0x88] sm:$0xff]
    %v852 = vld [vmem:[#allocation7 + $0x90] sm:$0xff]
    %v853 = vld [vmem:[#allocation7 + $0x98] sm:$0xff]
    %v854 = vld [vmem:[#allocation7 + $0xa0] sm:$0xff]
    %v855 = vld [vmem:[#allocation7 + $0xa8] sm:$0xff]
    %v856 = vld [vmem:[#allocation7 + $0xb0] sm:$0xff]
    %v857 = vld [vmem:[#allocation7 + $0xb8] sm:$0xff]
    %v858 = vld [vmem:[#allocation7 + $0xc0] sm:$0xff]
    %v859 = vld [vmem:[#allocation7 + $0xc8] sm:$0xff]
    %v860 = vld [vmem:[#allocation7 + $0xd0] sm:$0xff]
    %v861 = vld [vmem:[#allocation7 + $0xd8] sm:$0xff]
    %v862 = vld [vmem:[#allocation7 + $0xe0] sm:$0xff]
    %v863 = vld [vmem:[#allocation7 + $0xe8] sm:$0xff]
    %v864 = vld [vmem:[#allocation7 + $0xf0] sm:$0xff]
    %v865 = vld [vmem:[#allocation7 + $0xf8] sm:$0xff]
    %s866 = scalar_lea.vmem [#allocation8], 3
    %v867 = vld [vmem:[%s866] ss:$4 sm:$0x3]
    %v869 = vlaneseq
    %v870 = vshrl.u32 %v869, 7
    %v871 = vsub.s32 0, %v870
    %v872 = vrot.slane %v867, %v871
    %v873 = vlaneseq
    %v874 = vshrl.u32 %v873, 7
    %v875 = vsub.s32 1, %v874
    %v876 = vrot.slane %v867, %v875
    %v895 = vunpack.c.l.b16 %v850
    %v896 = vunpack.c.h.b16 %v850
    %v897 = vunpack.c.l.b16 %v851
    %v898 = vunpack.c.h.b16 %v851
    %v899 = vunpack.c.l.b16 %v852
    %v900 = vunpack.c.h.b16 %v852
    %v901 = vunpack.c.l.b16 %v853
    %v902 = vunpack.c.h.b16 %v853
    %v903 = vunpack.c.l.b16 %v854
    %v904 = vunpack.c.h.b16 %v854
    %v905 = vunpack.c.l.b16 %v855
    %v906 = vunpack.c.h.b16 %v855
    %v907 = vunpack.c.l.b16 %v856
    %v908 = vunpack.c.h.b16 %v856
    %v909 = vunpack.c.l.b16 %v857
    %v910 = vunpack.c.h.b16 %v857
    %v911 = vunpack.c.l.b16 %v858
    %v912 = vunpack.c.h.b16 %v858
    %v913 = vunpack.c.l.b16 %v859
    %v914 = vunpack.c.h.b16 %v859
    %v915 = vunpack.c.l.b16 %v860
    %v916 = vunpack.c.h.b16 %v860
    %v917 = vunpack.c.l.b16 %v861
    %v918 = vunpack.c.h.b16 %v861
    %v919 = vunpack.c.l.b16 %v862
    %v920 = vunpack.c.h.b16 %v862
    %v921 = vunpack.c.l.b16 %v863
    %v922 = vunpack.c.h.b16 %v863
    %v923 = vunpack.c.l.b16 %v864
    %v924 = vunpack.c.h.b16 %v864
    %v925 = vunpack.c.l.b16 %v865
    %v926 = vunpack.c.h.b16 %v865
    %v927 = vpack.c.b16 %v897, %v895
    %v928 = vpack.c.b16 %v898, %v896
    %v929 = vpack.c.b16 %v901, %v899
    %v930 = vpack.c.b16 %v902, %v900
    %v931 = vpack.c.b16 %v905, %v903
    %v932 = vpack.c.b16 %v906, %v904
    %v933 = vpack.c.b16 %v909, %v907
    %v934 = vpack.c.b16 %v910, %v908
    %v935 = vpack.c.b16 %v913, %v911
    %v936 = vpack.c.b16 %v914, %v912
    %v937 = vpack.c.b16 %v917, %v915
    %v938 = vpack.c.b16 %v918, %v916
    %v939 = vpack.c.b16 %v921, %v919
    %v940 = vpack.c.b16 %v922, %v920
    %v941 = vpack.c.b16 %v925, %v923
    %v942 = vpack.c.b16 %v926, %v924
    %959 = vmatprep.subr.bf16.mxu0 %v942
    %960 = vmatpush1.bf16.msra.mxu0 %v941
    %961 = vmatprep.subr.bf16.mxu0 %v940
    %962 = vmatpush1.bf16.msra.mxu0 %v939
    %963 = vmatprep.subr.bf16.mxu0 %v938
    %964 = vmatpush1.bf16.msra.mxu0 %v937
    %965 = vmatprep.subr.bf16.mxu0 %v936
    %966 = vmatpush1.bf16.msra.mxu0 %v935
    %967 = vmatprep.subr.bf16.mxu0 %v934
    %968 = vmatpush1.bf16.msra.mxu0 %v933
    %969 = vmatprep.subr.bf16.mxu0 %v932
    %970 = vmatpush1.bf16.msra.mxu0 %v931
    %971 = vmatprep.subr.bf16.mxu0 %v930
    %972 = vmatpush1.bf16.msra.mxu0 %v929
    %973 = vmatprep.subr.bf16.mxu0 %v928
    %974 = vmatpush1.bf16.msra.mxu0 %v927
    %975 = vmatprep.subr.bf16.mxu0 0
    %976 = vmatpush2.bf16.msra.mxu0 0
    %977 = vmatprep.subr.bf16.mxu0 0
    %978 = vmatpush2.bf16.msra.mxu0 0
    %979 = vmatprep.subr.bf16.mxu0 0
    %980 = vmatpush2.bf16.msra.mxu0 0
    %981 = vmatprep.subr.bf16.mxu0 0
    %982 = vmatpush2.bf16.msra.mxu0 0
    %983 = vmatprep.subr.bf16.mxu0 0
    %984 = vmatpush2.bf16.msra.mxu0 0
    %985 = vmatprep.subr.bf16.mxu0 0
    %986 = vmatpush2.bf16.msra.mxu0 0
    %987 = vmatprep.subr.bf16.mxu0 0
    %988 = vmatpush2.bf16.msra.mxu0 0
    %989 = vmatprep.subr.bf16.mxu0 0
    %990 = vmatpush2.bf16.msra.mxu0 0
    %991 = vmatprep.mubr.bf16.mxu0 0
    %992 = vmatmul.mubr.bf16.gmra.mxu0 %v846
    %v993 = vpop.f32.mrf.mxu0
    %v994 = vadd.f32 %v872, %v993
    %v995 = vpop.f32.mrf.mxu0
    %v996 = vadd.f32 %v876, %v995
    %v997 = vpop.f32.mrf.mxu0
    %v998 = vadd.f32 %v872, %v997
    %v999 = vpop.f32.mrf.mxu0
    %v1000 = vadd.f32 %v876, %v999
    %1001 = vmatprep.mubr.bf16.mxu0 0
    %1002 = vmatmul.mubr.bf16.gmra.mxu0 %v847
    %v1003 = vpop.f32.mrf.mxu0
    %v1004 = vadd.f32 %v872, %v1003
    %v1005 = vpop.f32.mrf.mxu0
    %v1006 = vadd.f32 %v876, %v1005
    %v1007 = vpop.f32.mrf.mxu0
    %v1008 = vadd.f32 %v872, %v1007
    %v1009 = vpop.f32.mrf.mxu0
    %v1010 = vadd.f32 %v876, %v1009
    %1011 = vmatprep.mubr.bf16.mxu0 0
    %1012 = vmatmul.mubr.bf16.gmra.mxu0 %v848
    %v1013 = vpop.f32.mrf.mxu0
    %v1014 = vadd.f32 %v872, %v1013
    %v1015 = vpop.f32.mrf.mxu0
    %v1016 = vadd.f32 %v876, %v1015
    %v1017 = vpop.f32.mrf.mxu0
    %v1018 = vadd.f32 %v872, %v1017
    %v1019 = vpop.f32.mrf.mxu0
    %v1020 = vadd.f32 %v876, %v1019
    %1021 = vmatprep.mubr.bf16.mxu0 0
    %1022 = vmatmul.mubr.bf16.gmra.mxu0 %v849
    %v1023 = vpop.f32.mrf.mxu0
    %v1024 = vadd.f32 %v872, %v1023
    %v1025 = vpop.f32.mrf.mxu0
    %v1026 = vadd.f32 %v876, %v1025
    %v1027 = vpop.f32.mrf.mxu0
    %v1028 = vadd.f32 %v872, %v1027
    %v1029 = vpop.f32.mrf.mxu0
    %v1030 = vadd.f32 %v876, %v1029
    %1031 = vdwg.mxu0
    %v1032 = vmax.f32 %v994, 0.0
    %v1033 = vmax.f32 %v996, 0.0
    %v1034 = vmax.f32 %v998, 0.0
    %v1035 = vmax.f32 %v1000, 0.0
    %v1036 = vmax.f32 %v1004, 0.0
    %v1037 = vmax.f32 %v1006, 0.0
    %v1038 = vmax.f32 %v1008, 0.0
    %v1039 = vmax.f32 %v1010, 0.0
    %v1040 = vmax.f32 %v1014, 0.0
    %v1041 = vmax.f32 %v1016, 0.0
    %v1042 = vmax.f32 %v1018, 0.0
    %v1043 = vmax.f32 %v1020, 0.0
    %v1044 = vmax.f32 %v1024, 0.0
    %v1045 = vmax.f32 %v1026, 0.0
    %v1046 = vmax.f32 %v1028, 0.0
    %v1047 = vmax.f32 %v1030, 0.0
    %1048 = vst [vmem:[#allocation10] sm:$0xff] %v1032
    %1049 = vst [vmem:[#allocation10 + $0x8] sm:$0xff] %v1033
    %1050 = vst [vmem:[#allocation10 + $0x10] sm:$0xff] %v1034
    %1051 = vst [vmem:[#allocation10 + $0x18] sm:$0xff] %v1035
    %1052 = vst [vmem:[#allocation10 + $0x20] sm:$0xff] %v1036
    %1053 = vst [vmem:[#allocation10 + $0x28] sm:$0xff] %v1037
    %1054 = vst [vmem:[#allocation10 + $0x30] sm:$0xff] %v1038
    %1055 = vst [vmem:[#allocation10 + $0x38] sm:$0xff] %v1039
    %1056 = vst [vmem:[#allocation10 + $0x40] sm:$0xff] %v1040
    %1057 = vst [vmem:[#allocation10 + $0x48] sm:$0xff] %v1041
    %1058 = vst [vmem:[#allocation10 + $0x50] sm:$0xff] %v1042
    %1059 = vst [vmem:[#allocation10 + $0x58] sm:$0xff] %v1043
    %1060 = vst [vmem:[#allocation10 + $0x60] sm:$0xff] %v1044
    %1061 = vst [vmem:[#allocation10 + $0x68] sm:$0xff] %v1045
    %1062 = vst [vmem:[#allocation10 + $0x70] sm:$0xff] %v1046
    %1063 = vst [vmem:[#allocation10 + $0x78] sm:$0xff] %v1047
    // Predicated region
    $region34: #{tpu_custom_call.1} parent=1 // pred_check
      _
    $region35: #{tpu_custom_call.1} parent=1 // pred_check_branch
      %1065 = sbr.rel (0) target = $region37
    $region36: #{tpu_custom_call.1} parent=1 // pred_region
      %s1067 = ssub.s32 2048, 2048
      %1068 = vsyncadd [#allocation4], %s1067
      %s1069 = sshll.u32 [#allocation10], 4
      %s1070 = int_to_ptr.vmem [resolvable:$true] %s1069
      %1075 = dma.vmem_to_hbm [thread:$0]  %s1070, 2048, %s4, [#allocation4], 256, 256, 16
    $region37: #{tpu_custom_call.1} parent=1 // pred_fallthru
      _
    // Predicated region
    $region38: #{tpu_custom_call.1} parent=1 // pred_check
      _
    $region39: #{tpu_custom_call.1} parent=1 // pred_check_branch
      %1077 = sbr.rel (0) target = $region41
    $region40: #{tpu_custom_call.1} parent=1 // pred_region
      %1078 = dma.done [#allocation4], 2048
    $region41: #{tpu_custom_call.1} parent=1 // pred_fallthru
      _
    %1079 = vsyncpa [#allocation3], 1
    %1080 = vsyncpa [#allocation6], 1
    %1081 = vsyncpa [#allocation9], 1
    %1082 = vsyncpa [#allocation4], 1

</llo_original>
